<compile_context>
chip_gen: v7x
topology: tpu7x:2x2x1
jax: 0.10.0
libtpu: 0.0.40
codegen_flags: <defaults>
</compile_context>

<pallas_src>
import functools

import jax
import jax.numpy as jnp
from jax import lax
from jax.experimental import pallas as pl
from jax.experimental.pallas import tpu as pltpu


def _adaptive_fm_kernel(x_ref, w_ref, b_ref, m_ref, o_ref, *, K, W):
    # x_ref: (1, TC, HWp)   one batch element x TC channels, spatial plane on lanes
    # w_ref: (K*K, TC, 1)   gamma-folded depthwise taps (per channel)
    # b_ref: (TC, 1)        gamma-folded bias (per channel)
    # m_ref: (K*K, 1, HWp)  precomputed zero-padding border masks (f32 0/1)
    # o_ref: (1, TC, HWp)   output block
    p = (K - 1) // 2

    x = x_ref[0].astype(jnp.float32)               # (TC, HWp)
    hwp = x.shape[1]

    # Residual is the accumulator's initial value; gamma*bias is folded in.
    acc = x + b_ref[...].astype(jnp.float32)       # (TC,1) broadcast over lanes

    for i in range(K):
        di = i - p
        # One lane rotate per row offset (XLU), reused by all K column taps of this row.
        row = x if di == 0 else pltpu.roll(x, (-di * W) % hwp, axis=1)
        for j in range(K):
            dj = j - p
            t = i * K + j
            wt = w_ref[t].astype(jnp.float32)      # (TC, 1)
            tap = row if dj == 0 else pltpu.roll(row, (-dj) % hwp, axis=1)
            if di == 0 and dj == 0:
                acc = acc + tap * wt               # center tap: mask is all-ones
            else:
                # mask zeroes wrapped lanes / out-of-image sources (zero "same" padding)
                acc = acc + (tap * m_ref[t]) * wt

    o_ref[0] = acc.astype(o_ref.dtype)


def _pick_channel_tile(C, HW_pad, N, *, budget_f32=4 << 20, min_block_f32=256 << 10,
                       min_steps=4):
    """Channel tile: divides C and is a multiple of 8 (or == C, the full-dim exception),
    sized on the f32 compute footprint.  Prefers the largest tile under the budget, then
    shrinks (when C allows) so the grid keeps >= min_steps parallel steps for megacore
    sharding / pipelining."""
    cands = sorted({C} | {t for t in range(8, C, 8) if C % t == 0}, reverse=True)
    fitting = [t for t in cands if t * HW_pad * 4 <= budget_f32]
    if not fitting:
        # Smallest legal channel tile; may still exceed the budget for extreme H*W.
        # (An H-tiled halo path would be needed for very large spatial planes.)
        return cands[-1]
    tc = fitting[0]
    if N * (C // tc) < min_steps:
        for t in fitting:  # descending: largest tile that still yields enough grid steps
            if N * (C // t) >= min_steps:
                if t * HW_pad * 4 >= min_block_f32:
                    tc = t
                break
    return tc


def adaptive_fm(x_nchw, weight_oikk, bias, gamma, kernel_size):
    """AdaptiveFM forward. x_nchw: (N,C,H,W); weight_oikk: (C,1,K,K); bias: (C,)."""
    N, C, H, W = x_nchw.shape
    K = kernel_size
    assert K % 2 == 1, "AdaptiveFM's residual add requires odd kernel_size"
    KK = K * K
    HW = H * W
    HW_pad = ((HW + 127) // 128) * 128
    p = (K - 1) // 2
    itemsize = jnp.dtype(x_nchw.dtype).itemsize

    # --- tiny parameter prep (O(C*K*K + K*K*H*W)); fold gamma into taps and bias -------
    gamma_f = jnp.asarray(gamma, jnp.float32)
    w_g = (weight_oikk.reshape(C, KK).T.astype(jnp.float32) * gamma_f)[:, :, None]  # (KK,C,1)
    b_g = (bias.astype(jnp.float32) * gamma_f).reshape(C, 1)                          # (C,1)

    # Per-tap border masks for zero "same" padding (padded lanes are masked too).
    lane = jnp.arange(HW_pad, dtype=jnp.int32)
    h_idx, w_idx = lane // W, lane % W
    masks = []
    for i in range(K):
        for j in range(K):
            di, dj = i - p, j - p
            hs, ws = h_idx + di, w_idx + dj
            masks.append((hs >= 0) & (hs < H) & (ws >= 0) & (ws < W))
    mask_f = jnp.stack(masks).astype(jnp.float32).reshape(KK, 1, HW_pad)

    # --- data layout: flatten the spatial plane onto the lane axis (free reshape) ------
    x_flat = x_nchw.reshape(N, C, HW)
    if HW_pad != HW:  # only when H*W isn't a 128 multiple; keeps every vst unmasked
        x_flat = jnp.pad(x_flat, ((0, 0), (0, 0), (0, HW_pad - HW)))

    TC = _pick_channel_tile(C, HW_pad, N)
    n_ct = C // TC

    # VMEM sizing: in+out double-buffered at stored dtype + f32 compute temporaries
    # + params, clamped to 48 MiB (safe within v7x's 64 MiB physical VMEM).
    blk_stored = TC * HW_pad * itemsize
    blk_f32 = TC * HW_pad * 4
    param_bytes = (KK * C + C) * 4 + KK * HW_pad * 4
    vmem_limit = 4 * blk_stored + 6 * blk_f32 + 4 * param_bytes + (4 << 20)
    vmem_limit = int(min(max(vmem_limit, 32 << 20), 48 << 20))

    kernel = functools.partial(_adaptive_fm_kernel, K=K, W=W)

    out_flat = pl.pallas_call(
        kernel,
        out_shape=jax.ShapeDtypeStruct((N, C, HW_pad), x_nchw.dtype),
        grid=(N, n_ct),
        in_specs=[
            pl.BlockSpec((1, TC, HW_pad), lambda n, ct: (n, ct, 0)),
            pl.BlockSpec((KK, TC, 1), lambda n, ct: (0, ct, 0)),
            pl.BlockSpec((TC, 1), lambda n, ct: (ct, 0)),
            pl.BlockSpec((KK, 1, HW_pad), lambda n, ct: (0, 0, 0)),
        ],
        out_specs=pl.BlockSpec((1, TC, HW_pad), lambda n, ct: (n, ct, 0)),
        compiler_params=pltpu.CompilerParams(
            dimension_semantics=("parallel", "parallel"),
            vmem_limit_bytes=vmem_limit,
        ),
        cost_estimate=pl.CostEstimate(
            flops=int(2 * N * C * HW * (KK + 1)),
            transcendentals=0,
            bytes_accessed=int(2 * N * C * HW_pad * itemsize
                               + (KK + 1) * C * 4 + KK * HW_pad * 4),
        ),
    )(x_flat, w_g, b_g, mask_f)

    out = out_flat[..., :HW] if HW_pad != HW else out_flat
    return out.reshape(N, C, H, W)


def adaptive_fm_reference(x_nchw, weight_oikk, bias, gamma):
    """Pure-JAX reference (depthwise conv via feature_group_count)."""
    N, C, H, W = x_nchw.shape
    x_nhwc = jnp.transpose(x_nchw, (0, 2, 3, 1))
    rhs = jnp.transpose(weight_oikk, (2, 3, 1, 0))  # (K, K, 1, C), HWIO with I=1
    conv = lax.conv_general_dilated(
        x_nhwc, rhs,
        window_strides=(1, 1),
        padding="SAME",
        dimension_numbers=("NHWC", "HWIO", "NHWC"),
        feature_group_count=C,
    ) + bias.reshape(1, 1, 1, C)
    out = conv * gamma + x_nhwc
    return jnp.transpose(out, (0, 3, 1, 2))


if __name__ == "__main__":
    # Small shapes consistent with the module: batch=2, channels=4, spatial=16x16, K=3.
    N, C, H, W, K = 2, 4, 16, 16, 3

    key = jax.random.PRNGKey(0)
    kx, kw, kb = jax.random.split(key, 3)
    x = jax.random.normal(kx, (N, C, H, W), dtype=jnp.float32)
    weight = jax.random.normal(kw, (C, 1, K, K), dtype=jnp.float32) * 0.1
    bias = jax.random.normal(kb, (C,), dtype=jnp.float32) * 0.1
    # Module inits gamma to 0 (identity); use a nonzero value so the conv path is exercised.
    gamma = jnp.float32(0.5)

    out = jax.block_until_ready(adaptive_fm(x, weight, bias, gamma, K))
    ref = adaptive_fm_reference(x, weight, bias, gamma)

    assert out.shape == (N, C, H, W)
    assert jnp.allclose(out, ref, atol=1e-4, rtol=1e-4), "mismatch vs reference"

    print("KERNEL_OK")
</pallas_src>

<mosaic_0001>
module attributes {stable_mosaic.version = 11 : i64} {
  func.func @_adaptive_fm_kernel(%arg0: i32, %arg1: i32, %arg2: memref<1x4x256xf32, #tpu.memory_space<vmem>>, %arg3: memref<9x4x1xf32, #tpu.memory_space<vmem>>, %arg4: memref<4x1xf32, #tpu.memory_space<vmem>>, %arg5: memref<9x1x256xf32, #tpu.memory_space<vmem>>, %arg6: memref<1x4x256xf32, #tpu.memory_space<vmem>>) attributes {dimension_semantics = [#tpu.dimension_semantics<parallel>, #tpu.dimension_semantics<parallel>], iteration_bounds = array<i64: 2, 1>, scalar_prefetch = 0 : i64, scratch_operands = 0 : i64, tpu.core_type = #tpu.core_type<tc>, window_params = [{transform_indices = @transform_0, window_bounds = array<i64: 1, 4, 256>}, {transform_indices = @transform_1, window_bounds = array<i64: 9, 4, 1>}, {transform_indices = @transform_2, window_bounds = array<i64: 4, 1>}, {pipeline_mode = #tpu.pipeline_mode<synchronous>, transform_indices = @transform_3, window_bounds = array<i64: 9, 1, 256>}, {transform_indices = @transform_4, window_bounds = array<i64: 1, 4, 256>}]} {
    %c0 = arith.constant 0 : index
    %c0_0 = arith.constant 0 : index
    %c0_1 = arith.constant 0 : index
    %0 = vector.load %arg2[%c0, %c0_0, %c0_1] : memref<1x4x256xf32, #tpu.memory_space<vmem>>, vector<1x4x256xf32>
    %1 = vector.shape_cast %0 : vector<1x4x256xf32> to vector<4x256xf32>
    %c0_2 = arith.constant 0 : index
    %c0_3 = arith.constant 0 : index
    %2 = vector.load %arg4[%c0_2, %c0_3] : memref<4x1xf32, #tpu.memory_space<vmem>>, vector<4x1xf32>
    %3 = vector.broadcast %2 : vector<4x1xf32> to vector<4x256xf32>
    %4 = arith.addf %1, %3 : vector<4x256xf32>
    %c16_i32 = arith.constant 16 : i32
    %5 = tpu.dynamic_rotate %1 by %c16_i32 dim 1 : vector<4x256xf32>, i32 -> vector<4x256xf32>
    %c0_4 = arith.constant 0 : index
    %c0_5 = arith.constant 0 : index
    %c0_6 = arith.constant 0 : index
    %6 = vector.load %arg3[%c0_4, %c0_5, %c0_6] : memref<9x4x1xf32, #tpu.memory_space<vmem>>, vector<1x4x1xf32>
    %7 = vector.shape_cast %6 : vector<1x4x1xf32> to vector<4x1xf32>
    %c1_i32 = arith.constant 1 : i32
    %8 = tpu.dynamic_rotate %5 by %c1_i32 dim 1 : vector<4x256xf32>, i32 -> vector<4x256xf32>
    %c0_7 = arith.constant 0 : index
    %c0_8 = arith.constant 0 : index
    %c0_9 = arith.constant 0 : index
    %9 = vector.load %arg5[%c0_7, %c0_8, %c0_9] : memref<9x1x256xf32, #tpu.memory_space<vmem>>, vector<1x1x256xf32>
    %10 = vector.shape_cast %9 : vector<1x1x256xf32> to vector<1x256xf32>
    %11 = vector.broadcast %10 : vector<1x256xf32> to vector<4x256xf32>
    %12 = arith.mulf %8, %11 : vector<4x256xf32>
    %13 = vector.broadcast %7 : vector<4x1xf32> to vector<4x256xf32>
    %14 = arith.mulf %12, %13 : vector<4x256xf32>
    %15 = arith.addf %4, %14 : vector<4x256xf32>
    %c1 = arith.constant 1 : index
    %c0_10 = arith.constant 0 : index
    %c0_11 = arith.constant 0 : index
    %16 = vector.load %arg3[%c1, %c0_10, %c0_11] : memref<9x4x1xf32, #tpu.memory_space<vmem>>, vector<1x4x1xf32>
    %17 = vector.shape_cast %16 : vector<1x4x1xf32> to vector<4x1xf32>
    %c1_12 = arith.constant 1 : index
    %c0_13 = arith.constant 0 : index
    %c0_14 = arith.constant 0 : index
    %18 = vector.load %arg5[%c1_12, %c0_13, %c0_14] : memref<9x1x256xf32, #tpu.memory_space<vmem>>, vector<1x1x256xf32>
    %19 = vector.shape_cast %18 : vector<1x1x256xf32> to vector<1x256xf32>
    %20 = vector.broadcast %19 : vector<1x256xf32> to vector<4x256xf32>
    %21 = arith.mulf %5, %20 : vector<4x256xf32>
    %22 = vector.broadcast %17 : vector<4x1xf32> to vector<4x256xf32>
    %23 = arith.mulf %21, %22 : vector<4x256xf32>
    %24 = arith.addf %15, %23 : vector<4x256xf32>
    %c2 = arith.constant 2 : index
    %c0_15 = arith.constant 0 : index
    %c0_16 = arith.constant 0 : index
    %25 = vector.load %arg3[%c2, %c0_15, %c0_16] : memref<9x4x1xf32, #tpu.memory_space<vmem>>, vector<1x4x1xf32>
    %26 = vector.shape_cast %25 : vector<1x4x1xf32> to vector<4x1xf32>
    %c255_i32 = arith.constant 255 : i32
    %27 = tpu.dynamic_rotate %5 by %c255_i32 dim 1 : vector<4x256xf32>, i32 -> vector<4x256xf32>
    %c2_17 = arith.constant 2 : index
    %c0_18 = arith.constant 0 : index
    %c0_19 = arith.constant 0 : index
    %28 = vector.load %arg5[%c2_17, %c0_18, %c0_19] : memref<9x1x256xf32, #tpu.memory_space<vmem>>, vector<1x1x256xf32>
    %29 = vector.shape_cast %28 : vector<1x1x256xf32> to vector<1x256xf32>
    %30 = vector.broadcast %29 : vector<1x256xf32> to vector<4x256xf32>
    %31 = arith.mulf %27, %30 : vector<4x256xf32>
    %32 = vector.broadcast %26 : vector<4x1xf32> to vector<4x256xf32>
    %33 = arith.mulf %31, %32 : vector<4x256xf32>
    %34 = arith.addf %24, %33 : vector<4x256xf32>
    %c3 = arith.constant 3 : index
    %c0_20 = arith.constant 0 : index
    %c0_21 = arith.constant 0 : index
    %35 = vector.load %arg3[%c3, %c0_20, %c0_21] : memref<9x4x1xf32, #tpu.memory_space<vmem>>, vector<1x4x1xf32>
    %36 = vector.shape_cast %35 : vector<1x4x1xf32> to vector<4x1xf32>
    %c1_i32_22 = arith.constant 1 : i32
    %37 = tpu.dynamic_rotate %1 by %c1_i32_22 dim 1 : vector<4x256xf32>, i32 -> vector<4x256xf32>
    %c3_23 = arith.constant 3 : index
    %c0_24 = arith.constant 0 : index
    %c0_25 = arith.constant 0 : index
    %38 = vector.load %arg5[%c3_23, %c0_24, %c0_25] : memref<9x1x256xf32, #tpu.memory_space<vmem>>, vector<1x1x256xf32>
    %39 = vector.shape_cast %38 : vector<1x1x256xf32> to vector<1x256xf32>
    %40 = vector.broadcast %39 : vector<1x256xf32> to vector<4x256xf32>
    %41 = arith.mulf %37, %40 : vector<4x256xf32>
    %42 = vector.broadcast %36 : vector<4x1xf32> to vector<4x256xf32>
    %43 = arith.mulf %41, %42 : vector<4x256xf32>
    %44 = arith.addf %34, %43 : vector<4x256xf32>
    %c4 = arith.constant 4 : index
    %c0_26 = arith.constant 0 : index
    %c0_27 = arith.constant 0 : index
    %45 = vector.load %arg3[%c4, %c0_26, %c0_27] : memref<9x4x1xf32, #tpu.memory_space<vmem>>, vector<1x4x1xf32>
    %46 = vector.shape_cast %45 : vector<1x4x1xf32> to vector<4x1xf32>
    %47 = vector.broadcast %46 : vector<4x1xf32> to vector<4x256xf32>
    %48 = arith.mulf %1, %47 : vector<4x256xf32>
    %49 = arith.addf %44, %48 : vector<4x256xf32>
    %c5 = arith.constant 5 : index
    %c0_28 = arith.constant 0 : index
    %c0_29 = arith.constant 0 : index
    %50 = vector.load %arg3[%c5, %c0_28, %c0_29] : memref<9x4x1xf32, #tpu.memory_space<vmem>>, vector<1x4x1xf32>
    %51 = vector.shape_cast %50 : vector<1x4x1xf32> to vector<4x1xf32>
    %c255_i32_30 = arith.constant 255 : i32
    %52 = tpu.dynamic_rotate %1 by %c255_i32_30 dim 1 : vector<4x256xf32>, i32 -> vector<4x256xf32>
    %c5_31 = arith.constant 5 : index
    %c0_32 = arith.constant 0 : index
    %c0_33 = arith.constant 0 : index
    %53 = vector.load %arg5[%c5_31, %c0_32, %c0_33] : memref<9x1x256xf32, #tpu.memory_space<vmem>>, vector<1x1x256xf32>
    %54 = vector.shape_cast %53 : vector<1x1x256xf32> to vector<1x256xf32>
    %55 = vector.broadcast %54 : vector<1x256xf32> to vector<4x256xf32>
    %56 = arith.mulf %52, %55 : vector<4x256xf32>
    %57 = vector.broadcast %51 : vector<4x1xf32> to vector<4x256xf32>
    %58 = arith.mulf %56, %57 : vector<4x256xf32>
    %59 = arith.addf %49, %58 : vector<4x256xf32>
    %c240_i32 = arith.constant 240 : i32
    %60 = tpu.dynamic_rotate %1 by %c240_i32 dim 1 : vector<4x256xf32>, i32 -> vector<4x256xf32>
    %c6 = arith.constant 6 : index
    %c0_34 = arith.constant 0 : index
    %c0_35 = arith.constant 0 : index
    %61 = vector.load %arg3[%c6, %c0_34, %c0_35] : memref<9x4x1xf32, #tpu.memory_space<vmem>>, vector<1x4x1xf32>
    %62 = vector.shape_cast %61 : vector<1x4x1xf32> to vector<4x1xf32>
    %c1_i32_36 = arith.constant 1 : i32
    %63 = tpu.dynamic_rotate %60 by %c1_i32_36 dim 1 : vector<4x256xf32>, i32 -> vector<4x256xf32>
    %c6_37 = arith.constant 6 : index
    %c0_38 = arith.constant 0 : index
    %c0_39 = arith.constant 0 : index
    %64 = vector.load %arg5[%c6_37, %c0_38, %c0_39] : memref<9x1x256xf32, #tpu.memory_space<vmem>>, vector<1x1x256xf32>
    %65 = vector.shape_cast %64 : vector<1x1x256xf32> to vector<1x256xf32>
    %66 = vector.broadcast %65 : vector<1x256xf32> to vector<4x256xf32>
    %67 = arith.mulf %63, %66 : vector<4x256xf32>
    %68 = vector.broadcast %62 : vector<4x1xf32> to vector<4x256xf32>
    %69 = arith.mulf %67, %68 : vector<4x256xf32>
    %70 = arith.addf %59, %69 : vector<4x256xf32>
    %c7 = arith.constant 7 : index
    %c0_40 = arith.constant 0 : index
    %c0_41 = arith.constant 0 : index
    %71 = vector.load %arg3[%c7, %c0_40, %c0_41] : memref<9x4x1xf32, #tpu.memory_space<vmem>>, vector<1x4x1xf32>
    %72 = vector.shape_cast %71 : vector<1x4x1xf32> to vector<4x1xf32>
    %c7_42 = arith.constant 7 : index
    %c0_43 = arith.constant 0 : index
    %c0_44 = arith.constant 0 : index
    %73 = vector.load %arg5[%c7_42, %c0_43, %c0_44] : memref<9x1x256xf32, #tpu.memory_space<vmem>>, vector<1x1x256xf32>
    %74 = vector.shape_cast %73 : vector<1x1x256xf32> to vector<1x256xf32>
    %75 = vector.broadcast %74 : vector<1x256xf32> to vector<4x256xf32>
    %76 = arith.mulf %60, %75 : vector<4x256xf32>
    %77 = vector.broadcast %72 : vector<4x1xf32> to vector<4x256xf32>
    %78 = arith.mulf %76, %77 : vector<4x256xf32>
    %79 = arith.addf %70, %78 : vector<4x256xf32>
    %c8 = arith.constant 8 : index
    %c0_45 = arith.constant 0 : index
    %c0_46 = arith.constant 0 : index
    %80 = vector.load %arg3[%c8, %c0_45, %c0_46] : memref<9x4x1xf32, #tpu.memory_space<vmem>>, vector<1x4x1xf32>
    %81 = vector.shape_cast %80 : vector<1x4x1xf32> to vector<4x1xf32>
    %c255_i32_47 = arith.constant 255 : i32
    %82 = tpu.dynamic_rotate %60 by %c255_i32_47 dim 1 : vector<4x256xf32>, i32 -> vector<4x256xf32>
    %c8_48 = arith.constant 8 : index
    %c0_49 = arith.constant 0 : index
    %c0_50 = arith.constant 0 : index
    %83 = vector.load %arg5[%c8_48, %c0_49, %c0_50] : memref<9x1x256xf32, #tpu.memory_space<vmem>>, vector<1x1x256xf32>
    %84 = vector.shape_cast %83 : vector<1x1x256xf32> to vector<1x256xf32>
    %85 = vector.broadcast %84 : vector<1x256xf32> to vector<4x256xf32>
    %86 = arith.mulf %82, %85 : vector<4x256xf32>
    %87 = vector.broadcast %81 : vector<4x1xf32> to vector<4x256xf32>
    %88 = arith.mulf %86, %87 : vector<4x256xf32>
    %89 = arith.addf %79, %88 : vector<4x256xf32>
    %c0_51 = arith.constant 0 : index
    %c0_52 = arith.constant 0 : index
    %c0_53 = arith.constant 0 : index
    %90 = vector.load %arg6[%c0_51, %c0_52, %c0_53] : memref<1x4x256xf32, #tpu.memory_space<vmem>>, vector<1x4x256xf32>
    %91 = vector.shape_cast %90 : vector<1x4x256xf32> to vector<4x256xf32>
    %92 = vector.shape_cast %89 : vector<4x256xf32> to vector<1x4x256xf32>
    tpu.vector_store %arg6[%c0_51, %c0_52, %c0_53], %92 {strides = array<i32>} : memref<1x4x256xf32, #tpu.memory_space<vmem>>, vector<1x4x256xf32>,
    return
  }
  func.func @transform_0(%arg0: i32, %arg1: i32) -> (i32, i32, i32) {
    %c0_i32 = arith.constant 0 : i32
    %c0_i32_0 = arith.constant 0 : i32
    return %arg0, %arg1, %c0_i32 : i32, i32, i32
  }
  func.func @transform_1(%arg0: i32, %arg1: i32) -> (i32, i32, i32) {
    %c0_i32 = arith.constant 0 : i32
    %c0_i32_0 = arith.constant 0 : i32
    %c0_i32_1 = arith.constant 0 : i32
    return %c0_i32, %arg1, %c0_i32_0 : i32, i32, i32
  }
  func.func @transform_2(%arg0: i32, %arg1: i32) -> (i32, i32) {
    %c0_i32 = arith.constant 0 : i32
    %c0_i32_0 = arith.constant 0 : i32
    return %arg1, %c0_i32 : i32, i32
  }
  func.func @transform_3(%arg0: i32, %arg1: i32) -> (i32, i32, i32) {
    %c0_i32 = arith.constant 0 : i32
    %c0_i32_0 = arith.constant 0 : i32
    %c0_i32_1 = arith.constant 0 : i32
    %c0_i32_2 = arith.constant 0 : i32
    return %c0_i32, %c0_i32_0, %c0_i32_1 : i32, i32, i32
  }
  func.func @transform_4(%arg0: i32, %arg1: i32) -> (i32, i32, i32) {
    %c0_i32 = arith.constant 0 : i32
    %c0_i32_0 = arith.constant 0 : i32
    return %arg0, %arg1, %c0_i32 : i32, i32, i32
  }
}

</mosaic_0001>

<llo_original>
// kernel: tpu_custom_call.1
$region0: #{tpu_custom_call.1}
  #allocation0 [shape = 'u32[]', space=smem, size = 0x4, offset = 0x4, fixed_abs, tag = 'smem constant byte address 0x4 - core index']
  #allocation1 [shape = 'u32[144,128]{1,0:T(1,128)}', space=vmem, size = 0x12000, scoped, tag = 'internal scratch']
  %s0 = inlined_call_operand.vmem [shape: f32[2,4,256], index: 0, kind: input, shape index: {}]
  %s1 = inlined_call_operand.vmem [shape: f32[9,4,1], index: 1, kind: input, shape index: {}]
  %s2 = inlined_call_operand.vmem [shape: f32[4,1], index: 2, kind: input, shape index: {}]
  %s3 = inlined_call_operand.vmem [shape: f32[9,1,256], index: 3, kind: input, shape index: {}]
  %s4 = inlined_call_operand.hbm [shape: f32[2,4,256], index: 4, kind: output, shape index: {}]
  %s5 = sld [smem:[#allocation0]]
  $region49: #{tpu_custom_call.1} parent=0
    _
  %s7 = ssub.s32 1, %s5
  %s8 = scalar_select 0, %s7, %s5
  $region1: #{tpu_custom_call.1} parent=0
    #allocation2 [shape = 'u8[8192]{0}', space=vmem, size = 0x2000, scoped, tag = 'output window, operand 0']
    #allocation3 [shape = 's32[2]{0}', space=sflag, size = 0x8, scoped, tag = 'scoped memory for tpu_custom_call.1']
    %9 = vsyncpa [#allocation3], 0
    %s10 = scalar_lea.sflag [#allocation3], 1
    %11 = vsyncpa %s10, 0
    loop: start=0, step=1, limit=4
    $region2: #{tpu_custom_call.1} parent=1 // loop_pre_header
      _
    $region3: #{tpu_custom_call.1} parent=1 // loop_header
      %s13 = sphi 0, %s17
      %p14 = scmp.ge.s32.totalorder %s13, 4
      %s20 = sphi 0, %s32
      %s21 = sphi 0, %s28
      %s22 = sphi 0, %s20
      %s23 = sphi 0, %s21
      %s24 = sphi 0, %s22
      %s25 = sphi 0, %s23
      %s37 = sphi 0, %s39
      %s40 = sphi 0, %s37
      %s41 = sphi 0, %s40
      %s57 = sphi 0, %s41
      %s63 = sphi 0, %s65
      %s66 = sphi 0, %s63
      %s67 = sphi 0, %s66
      %s83 = sphi 0, %s67
      %s89 = sphi 0, %s91
      %s92 = sphi 0, %s89
      %s93 = sphi 0, %s92
      %s109 = sphi 0, %s93
      %s113 = sphi 0, %s113
      %s115 = sphi 0, %s113
      %s116 = sphi 0, %s115
      %s130 = sphi 0, %s116
      %s138 = sphi 0, %s140
      %s141 = sphi 0, %s138
      %s142 = sphi 0, %s141
      %s158 = sphi 0, %s142
    $region4: #{tpu_custom_call.1} parent=1 // loop_header_branch
      %16 = sbr.rel (%p14) target = $region8
    $region5: #{tpu_custom_call.1} parent=1 // loop_body
      %s18 = ssub.s32 %s13, 1
      %s19 = ssub.s32 %s13, 2
      %s26 = sadd.s32 1, %s21
      %p27 = scmp.ge.s32.totalorder %s26, 1
      %s28 = scalar_select %p27, 0, %s26
      %s29 = sadd.s32 1, %s20
      %s30 = scalar_select %p27, %s29, %s20
      %p31 = scmp.ge.s32.totalorder %s30, 2
      %s32 = scalar_select %p31, 0, %s30
      %s33 = ssub.s32 %s20, %s32
      %s34 = ssub.s32 %s21, %s28
      %s35 = sor.u32 %s33, %s34
      %p36 = scmp.eq.s32.totalorder %s35, 0
      %s38 = sadd.s32 %s37, 1
      %s39 = scalar_select %p36, %s37, %s38
      %p42 = pneg %p36
      %p43 = scmp.eq.s32.totalorder %s13, 1
      %p44 = por %p42, %p43
      %p45 = scmp.ne.s32.totalorder %s37, %s40
      %p46 = scmp.eq.s32.totalorder %s13, 0
      %p47 = por %p45, %p46
      %p48 = scmp.ne.s32.totalorder %s37, %s40
      %p49 = scmp.eq.s32.totalorder %s18, 1
      %p50 = por %p48, %p49
      %p51 = scmp.ne.s32.totalorder %s40, %s41
      %p52 = scmp.eq.s32.totalorder %s18, 0
      %p53 = por %p51, %p52
      %p54 = scmp.ne.s32.totalorder %s40, %s41
      %p55 = scmp.eq.s32.totalorder %s19, 1
      %p56 = por %p54, %p55
      %p58 = scmp.ne.s32.totalorder %s41, %s57
      %p59 = scmp.eq.s32.totalorder %s19, 0
      %p60 = por %p58, %p59
      %s61 = ssub.s32 %s21, %s28
      %p62 = scmp.eq.s32.totalorder %s61, 0
      %s64 = sadd.s32 %s63, 1
      %s65 = scalar_select %p62, %s63, %s64
      %p68 = pneg %p62
      %p69 = scmp.eq.s32.totalorder %s13, 1
      %p70 = por %p68, %p69
      %p71 = scmp.ne.s32.totalorder %s63, %s66
      %p72 = scmp.eq.s32.totalorder %s13, 0
      %p73 = por %p71, %p72
      %p74 = scmp.ne.s32.totalorder %s63, %s66
      %p75 = scmp.eq.s32.totalorder %s18, 1
      %p76 = por %p74, %p75
      %p77 = scmp.ne.s32.totalorder %s66, %s67
      %p78 = scmp.eq.s32.totalorder %s18, 0
      %p79 = por %p77, %p78
      %p80 = scmp.ne.s32.totalorder %s66, %s67
      %p81 = scmp.eq.s32.totalorder %s19, 1
      %p82 = por %p80, %p81
      %p84 = scmp.ne.s32.totalorder %s67, %s83
      %p85 = scmp.eq.s32.totalorder %s19, 0
      %p86 = por %p84, %p85
      %s87 = ssub.s32 %s21, %s28
      %p88 = scmp.eq.s32.totalorder %s87, 0
      %s90 = sadd.s32 %s89, 1
      %s91 = scalar_select %p88, %s89, %s90
      %p94 = pneg %p88
      %p95 = scmp.eq.s32.totalorder %s13, 1
      %p96 = por %p94, %p95
      %p97 = scmp.ne.s32.totalorder %s89, %s92
      %p98 = scmp.eq.s32.totalorder %s13, 0
      %p99 = por %p97, %p98
      %p100 = scmp.ne.s32.totalorder %s89, %s92
      %p101 = scmp.eq.s32.totalorder %s18, 1
      %p102 = por %p100, %p101
      %p103 = scmp.ne.s32.totalorder %s92, %s93
      %p104 = scmp.eq.s32.totalorder %s18, 0
      %p105 = por %p103, %p104
      %p106 = scmp.ne.s32.totalorder %s92, %s93
      %p107 = scmp.eq.s32.totalorder %s19, 1
      %p108 = por %p106, %p107
      %p110 = scmp.ne.s32.totalorder %s93, %s109
      %p111 = scmp.eq.s32.totalorder %s19, 0
      %p112 = por %p110, %p111
      %s114 = sadd.s32 %s113, 1
      %p117 = scmp.eq.s32.totalorder %s13, 1
      %p118 = scmp.ne.s32.totalorder %s113, %s115
      %p119 = scmp.eq.s32.totalorder %s13, 0
      %p120 = por %p118, %p119
      %p121 = scmp.ne.s32.totalorder %s113, %s115
      %p122 = scmp.eq.s32.totalorder %s18, 1
      %p123 = por %p121, %p122
      %p124 = scmp.ne.s32.totalorder %s115, %s116
      %p125 = scmp.eq.s32.totalorder %s18, 0
      %p126 = por %p124, %p125
      %p127 = scmp.ne.s32.totalorder %s115, %s116
      %p128 = scmp.eq.s32.totalorder %s19, 1
      %p129 = por %p127, %p128
      %p131 = scmp.ne.s32.totalorder %s116, %s130
      %p132 = scmp.eq.s32.totalorder %s19, 0
      %p133 = por %p131, %p132
      %s134 = ssub.s32 %s20, %s32
      %s135 = ssub.s32 %s21, %s28
      %s136 = sor.u32 %s134, %s135
      %p137 = scmp.eq.s32.totalorder %s136, 0
      %s139 = sadd.s32 %s138, 1
      %s140 = scalar_select %p137, %s138, %s139
      %p143 = pneg %p137
      %p144 = scmp.eq.s32.totalorder %s13, 1
      %p145 = por %p143, %p144
      %p146 = scmp.ne.s32.totalorder %s138, %s141
      %p147 = scmp.eq.s32.totalorder %s13, 0
      %p148 = por %p146, %p147
      %p149 = scmp.ne.s32.totalorder %s138, %s141
      %p150 = scmp.eq.s32.totalorder %s18, 1
      %p151 = por %p149, %p150
      %p152 = scmp.ne.s32.totalorder %s141, %s142
      %p153 = scmp.eq.s32.totalorder %s18, 0
      %p154 = por %p152, %p153
      %p155 = scmp.ne.s32.totalorder %s141, %s142
      %p156 = scmp.eq.s32.totalorder %s19, 1
      %p157 = por %p155, %p156
      %p159 = scmp.ne.s32.totalorder %s142, %s158
      %p160 = scmp.eq.s32.totalorder %s19, 0
      %p161 = por %p159, %p160
      %p162 = scmp.le.s32.totalorder 1, %s13
      %p163 = scmp.lt.s32.totalorder %s13, 3
      %p164 = pnand %p162, %p163
      %p165 = pneg %p164
      // Predicated region
      $region9: #{tpu_custom_call.1} parent=5 // pred_check
        _
      $region10: #{tpu_custom_call.1} parent=5 // pred_check_branch
        %167 = sbr.rel (%p164) target = $region12
      $region11: #{tpu_custom_call.1} parent=5 // pred_region
        %s168 = ssub.s32 %s13, 1
        // Predicated region
        $region13: #{tpu_custom_call.1} parent=11 // pred_check
          %p169 = pneg %p79
        $region14: #{tpu_custom_call.1} parent=11 // pred_check_branch
          %171 = sbr.rel (%p169) target = $region16
        $region15: #{tpu_custom_call.1} parent=11 // pred_region
          %p172 = scmp.lt.s32.totalorder %s23, 0
          %s173 = scalar_select %p172, %s23, 0
          %s174 = smul.addr %s173, 4
          %s175 = scalar_lea.vmem %s1, %s174
        $region16: #{tpu_custom_call.1} parent=11 // pred_fallthru
          _
        // Predicated region
        $region17: #{tpu_custom_call.1} parent=11 // pred_check
          %p176 = pneg %p105
        $region18: #{tpu_custom_call.1} parent=11 // pred_check_branch
          %178 = sbr.rel (%p176) target = $region20
        $region19: #{tpu_custom_call.1} parent=11 // pred_region
          %p179 = scmp.lt.s32.totalorder %s23, 0
          %s180 = scalar_select %p179, %s23, 0
          %s181 = smul.addr %s180, 4
          %s182 = scalar_lea.vmem %s2, %s181
        $region20: #{tpu_custom_call.1} parent=11 // pred_fallthru
          _
        // Predicated region
        $region21: #{tpu_custom_call.1} parent=11 // pred_check
          %p183 = pneg %p126
        $region22: #{tpu_custom_call.1} parent=11 // pred_check_branch
          %185 = sbr.rel (%p183) target = $region24
        $region23: #{tpu_custom_call.1} parent=11 // pred_region
          _
        $region24: #{tpu_custom_call.1} parent=11 // pred_fallthru
          _
      $region12: #{tpu_custom_call.1} parent=5 // pred_fallthru
        _
      %p186 = scmp.lt.s32.totalorder %s13, 2
      // Predicated region
      $region25: #{tpu_custom_call.1} parent=5 // pred_check
        %p187 = pneg %p186
      $region26: #{tpu_custom_call.1} parent=5 // pred_check_branch
        %189 = sbr.rel (%p187) target = $region28
      $region27: #{tpu_custom_call.1} parent=5 // pred_region
        // Predicated region
        $region29: #{tpu_custom_call.1} parent=27 // pred_check
          %p190 = pneg %p47
        $region30: #{tpu_custom_call.1} parent=27 // pred_check_branch
          %192 = sbr.rel (%p190) target = $region32
        $region31: #{tpu_custom_call.1} parent=27 // pred_region
          %p193 = scmp.lt.s32.totalorder %s20, 1
          %s194 = scalar_select %p193, %s20, 1
          %p195 = scmp.lt.s32.totalorder %s21, 0
          %s196 = scalar_select %p195, %s21, 0
          %s197 = smul.addr %s196, 2
          %s198 = smul.addr %s194, 2
          %s199 = sadd.s32 %s197, %s198
          %s200 = smul.addr %s199, 4
          %s201 = scalar_lea.vmem %s0, %s200
        $region32: #{tpu_custom_call.1} parent=27 // pred_fallthru
          _
      $region28: #{tpu_custom_call.1} parent=5 // pred_fallthru
        _
      %p202 = scmp.le.s32.totalorder 1, %s13
      %p203 = scmp.lt.s32.totalorder %s13, 3
      %p204 = pnand %p202, %p203
      %p205 = pneg %p204
      // Predicated region
      $region33: #{tpu_custom_call.1} parent=5 // pred_check
        _
      $region34: #{tpu_custom_call.1} parent=5 // pred_check_branch
        %207 = sbr.rel (%p204) target = $region36
      $region35: #{tpu_custom_call.1} parent=5 // pred_region
        %s208 = ssub.s32 %s13, 1
        %p209 = scmp.lt.s32.totalorder %s22, 1
        %s210 = scalar_select %p209, %s22, 1
        %p211 = scmp.lt.s32.totalorder %s23, 0
        %s212 = scalar_select %p211, %s23, 0
        %s213 = smul.addr %s212, 2
        %s214 = smul.addr %s210, 2
        %s215 = sadd.s32 %s213, %s214
        %s216 = smul.addr %s215, 4
        %s217 = scalar_lea.vmem %s0, %s216
        %p218 = pneg %p53
        %p219 = pneg %p50
        %p220 = scmp.lt.s32.totalorder %s23, 0
        %s221 = scalar_select %p220, %s23, 0
        %s222 = smul.addr %s221, 4
        %s223 = scalar_lea.vmem %s1, %s222
        %p224 = pneg %p79
        %p225 = pneg %p76
        %p226 = scmp.lt.s32.totalorder %s23, 0
        %s227 = scalar_select %p226, %s23, 0
        %s228 = smul.addr %s227, 4
        %s229 = scalar_lea.vmem %s2, %s228
        %p230 = pneg %p105
        %p231 = pneg %p102
        %p232 = pneg %p126
        %p233 = pneg %p123
        %p234 = pneg %p154
        %p235 = pneg %p151
        %s236 = sand.u32 %s141, 1
        %s237 = scalar_lea.sflag [#allocation3], %s236
        %s238 = sand.u32 %s141, 1
        %s239 = smul.addr %s238, 8
        %s240 = scalar_lea.vmem [#allocation2], %s239
        %p241 = scmp.lt.s32.totalorder %s22, 1
        %s242 = scalar_select %p241, %s22, 1
        %p243 = scmp.lt.s32.totalorder %s23, 0
        %s244 = scalar_select %p243, %s23, 0
        %s245 = smul.addr %s244, 2
        %s246 = smul.addr %s242, 2
        %s247 = sadd.s32 %s245, %s246
        %s248 = smul.addr %s247, 4
        %s249 = scalar_lea.vmem %s0, %s248
        %p250 = scmp.lt.s32.totalorder %s23, 0
        %s251 = scalar_select %p250, %s23, 0
        %s252 = smul.addr %s251, 4
        %s253 = scalar_lea.vmem %s1, %s252
        %p254 = scmp.lt.s32.totalorder %s23, 0
        %s255 = scalar_select %p254, %s23, 0
        %s256 = smul.addr %s255, 4
        %s257 = scalar_lea.vmem %s2, %s256
        %v258 = vld [vmem:[%s249] sm:$0xff]
        %v259 = vld [vmem:[%s257] sm:$0xf]
        %261 = vset.pattern.permute.xlu0 0
        %262 = vperm.xlu0 %261, %v259
        %v263 = vpop.permute.xlu0 %262
        %v265 = vunpack.c.l.s4 839922192
        %v266 = vunpack.c.0.s8 %v265
        %v267 = vlaneseq
        %v268 = vshrl.u32 %v267, 7
        %v269 = vsub.s32 %v266, %v268
        %v270 = vrot.slane %v263, %v269
        %v272 = vadd.f32 %v258, %v270
        %v274 = vcombine.high %v258, %v258
        %276 = vrot.lane.b32.xlu0 %v258, 16
        %v277 = vpop.permute.xlu0 %276
        %278 = vrot.lane.b32.xlu0 %v274, 16
        %v279 = vpop.permute.xlu0 %278
        %v280 = vlaneseq
        %v281 = vand.u32 %v280, 127
        %vm282 = vcmp.lt.s32.totalorder %v281, 16
        %v283 = vsel %vm282, %v277, %v279
        %v284 = vsel %vm282, %v279, %v277
        %v285 = vld [vmem:[%s253] sm:$0xf]
        %286 = vrot.lane.b32.xlu0 %v284, 1
        %v287 = vpop.permute.xlu0 %286
        %288 = vrot.lane.b32.xlu0 %v283, 1
        %v289 = vpop.permute.xlu0 %288
        %vm290 = vcmp.lt.s32.totalorder %v281, 1
        %v291 = vsel %vm290, %v287, %v289
        %v292 = vsel %vm290, %v289, %v287
        %v293 = vld [vmem:[%s3] sm:$0x3]
        %v295 = vlaneseq
        %v296 = vshrl.u32 %v295, 7
        %v297 = vsub.s32 0, %v296
        %v298 = vrot.slane %v293, %v297
        %v299 = vlaneseq
        %v300 = vshrl.u32 %v299, 7
        %v301 = vsub.s32 1, %v300
        %v302 = vrot.slane %v293, %v301
        %v305 = vmul.f32 %v292, %v298
        %v306 = vmul.f32 %v291, %v302
        %308 = vset.pattern.permute.xlu0 0
        %309 = vperm.xlu0 %308, %v285
        %v310 = vpop.permute.xlu0 %309
        %v312 = vmul.f32 %v305, %v310
        %v313 = vmul.f32 %v306, %v310
        %v316 = vcombine.low %v312, %v313
        %v318 = vadd.f32 %v272, %v316
        %s319 = scalar_lea.vmem %s253, 4
        %v320 = vld [vmem:[%s319] sm:$0xf]
        %s321 = scalar_lea.vmem %s3, 2
        %v322 = vld [vmem:[%s321] sm:$0x3]
        %v324 = vlaneseq
        %v325 = vshrl.u32 %v324, 7
        %v326 = vsub.s32 0, %v325
        %v327 = vrot.slane %v322, %v326
        %v328 = vlaneseq
        %v329 = vshrl.u32 %v328, 7
        %v330 = vsub.s32 1, %v329
        %v331 = vrot.slane %v322, %v330
        %v334 = vmul.f32 %v284, %v327
        %v335 = vmul.f32 %v283, %v331
        %337 = vset.pattern.permute.xlu0 0
        %338 = vperm.xlu0 %337, %v320
        %v339 = vpop.permute.xlu0 %338
        %v341 = vmul.f32 %v334, %v339
        %v342 = vmul.f32 %v335, %v339
        %v345 = vcombine.low %v341, %v342
        %v347 = vadd.f32 %v318, %v345
        %s348 = scalar_lea.vmem %s253, 8
        %v349 = vld [vmem:[%s348] sm:$0xf]
        %350 = vrot.lane.b32.xlu0 %v284, 127
        %v351 = vpop.permute.xlu0 %350
        %352 = vrot.lane.b32.xlu0 %v283, 127
        %v353 = vpop.permute.xlu0 %352
        %vm354 = vcmp.lt.s32.totalorder %v281, 127
        %v355 = vsel %vm354, %v351, %v353
        %v356 = vsel %vm354, %v353, %v351
        %s357 = scalar_lea.vmem %s3, 4
        %v358 = vld [vmem:[%s357] sm:$0x3]
        %v360 = vlaneseq
        %v361 = vshrl.u32 %v360, 7
        %v362 = vsub.s32 0, %v361
        %v363 = vrot.slane %v358, %v362
        %v364 = vlaneseq
        %v365 = vshrl.u32 %v364, 7
        %v366 = vsub.s32 1, %v365
        %v367 = vrot.slane %v358, %v366
        %v370 = vmul.f32 %v355, %v363
        %v371 = vmul.f32 %v356, %v367
        %373 = vset.pattern.permute.xlu0 0
        %374 = vperm.xlu0 %373, %v349
        %v375 = vpop.permute.xlu0 %374
        %v377 = vmul.f32 %v370, %v375
        %v378 = vmul.f32 %v371, %v375
        %v381 = vcombine.low %v377, %v378
        %v383 = vadd.f32 %v347, %v381
        %s384 = scalar_lea.vmem %s253, 12
        %v385 = vld [vmem:[%s384] sm:$0xf]
        %386 = vrot.lane.b32.xlu0 %v258, 1
        %v387 = vpop.permute.xlu0 %386
        %388 = vrot.lane.b32.xlu0 %v274, 1
        %v389 = vpop.permute.xlu0 %388
        %v390 = vsel %vm290, %v387, %v389
        %v391 = vsel %vm290, %v389, %v387
        %s392 = scalar_lea.vmem %s3, 6
        %v393 = vld [vmem:[%s392] sm:$0x3]
        %v395 = vlaneseq
        %v396 = vshrl.u32 %v395, 7
        %v397 = vsub.s32 0, %v396
        %v398 = vrot.slane %v393, %v397
        %v399 = vlaneseq
        %v400 = vshrl.u32 %v399, 7
        %v401 = vsub.s32 1, %v400
        %v402 = vrot.slane %v393, %v401
        %v405 = vmul.f32 %v391, %v398
        %v406 = vmul.f32 %v390, %v402
        %408 = vset.pattern.permute.xlu0 0
        %409 = vperm.xlu0 %408, %v385
        %v410 = vpop.permute.xlu0 %409
        %v412 = vmul.f32 %v405, %v410
        %v413 = vmul.f32 %v406, %v410
        %v416 = vcombine.low %v412, %v413
        %v418 = vadd.f32 %v383, %v416
        %s419 = scalar_lea.vmem %s253, 16
        %v420 = vld [vmem:[%s419] sm:$0xf]
        %422 = vset.pattern.permute.xlu0 0
        %423 = vperm.xlu0 %422, %v420
        %v424 = vpop.permute.xlu0 %423
        %v426 = vunpack.c.l.s4 839922192
        %v427 = vunpack.c.0.s8 %v426
        %v428 = vlaneseq
        %v429 = vshrl.u32 %v428, 7
        %v430 = vsub.s32 %v427, %v429
        %v431 = vrot.slane %v424, %v430
        %v433 = vmul.f32 %v258, %v431
        %v434 = vadd.f32 %v418, %v433
        %s435 = scalar_lea.vmem %s253, 20
        %v436 = vld [vmem:[%s435] sm:$0xf]
        %437 = vrot.lane.b32.xlu0 %v258, 127
        %v438 = vpop.permute.xlu0 %437
        %439 = vrot.lane.b32.xlu0 %v274, 127
        %v440 = vpop.permute.xlu0 %439
        %v441 = vsel %vm354, %v438, %v440
        %v442 = vsel %vm354, %v440, %v438
        %s443 = scalar_lea.vmem %s3, 10
        %v444 = vld [vmem:[%s443] sm:$0x3]
        %v446 = vlaneseq
        %v447 = vshrl.u32 %v446, 7
        %v448 = vsub.s32 0, %v447
        %v449 = vrot.slane %v444, %v448
        %v450 = vlaneseq
        %v451 = vshrl.u32 %v450, 7
        %v452 = vsub.s32 1, %v451
        %v453 = vrot.slane %v444, %v452
        %v456 = vmul.f32 %v441, %v449
        %v457 = vmul.f32 %v442, %v453
        %459 = vset.pattern.permute.xlu0 0
        %460 = vperm.xlu0 %459, %v436
        %v461 = vpop.permute.xlu0 %460
        %v463 = vmul.f32 %v456, %v461
        %v464 = vmul.f32 %v457, %v461
        %v467 = vcombine.low %v463, %v464
        %v469 = vadd.f32 %v434, %v467
        %470 = vrot.lane.b32.xlu0 %v258, 112
        %v471 = vpop.permute.xlu0 %470
        %472 = vrot.lane.b32.xlu0 %v274, 112
        %v473 = vpop.permute.xlu0 %472
        %vm474 = vcmp.lt.s32.totalorder %v281, 112
        %v475 = vsel %vm474, %v471, %v473
        %v476 = vsel %vm474, %v473, %v471
        %s477 = scalar_lea.vmem %s253, 24
        %v478 = vld [vmem:[%s477] sm:$0xf]
        %479 = vrot.lane.b32.xlu0 %v475, 1
        %v480 = vpop.permute.xlu0 %479
        %481 = vrot.lane.b32.xlu0 %v476, 1
        %v482 = vpop.permute.xlu0 %481
        %v483 = vsel %vm290, %v480, %v482
        %v484 = vsel %vm290, %v482, %v480
        %s485 = scalar_lea.vmem %s3, 12
        %v486 = vld [vmem:[%s485] sm:$0x3]
        %v488 = vlaneseq
        %v489 = vshrl.u32 %v488, 7
        %v490 = vsub.s32 0, %v489
        %v491 = vrot.slane %v486, %v490
        %v492 = vlaneseq
        %v493 = vshrl.u32 %v492, 7
        %v494 = vsub.s32 1, %v493
        %v495 = vrot.slane %v486, %v494
        %v498 = vmul.f32 %v484, %v491
        %v499 = vmul.f32 %v483, %v495
        %501 = vset.pattern.permute.xlu0 0
        %502 = vperm.xlu0 %501, %v478
        %v503 = vpop.permute.xlu0 %502
        %v505 = vmul.f32 %v498, %v503
        %v506 = vmul.f32 %v499, %v503
        %v509 = vcombine.low %v505, %v506
        %v511 = vadd.f32 %v469, %v509
        %s512 = scalar_lea.vmem %s253, 28
        %v513 = vld [vmem:[%s512] sm:$0xf]
        %s514 = scalar_lea.vmem %s3, 14
        %v515 = vld [vmem:[%s514] sm:$0x3]
        %v517 = vlaneseq
        %v518 = vshrl.u32 %v517, 7
        %v519 = vsub.s32 0, %v518
        %v520 = vrot.slane %v515, %v519
        %v521 = vlaneseq
        %v522 = vshrl.u32 %v521, 7
        %v523 = vsub.s32 1, %v522
        %v524 = vrot.slane %v515, %v523
        %v527 = vmul.f32 %v475, %v520
        %v528 = vmul.f32 %v476, %v524
        %530 = vset.pattern.permute.xlu0 0
        %531 = vperm.xlu0 %530, %v513
        %v532 = vpop.permute.xlu0 %531
        %v534 = vmul.f32 %v527, %v532
        %v535 = vmul.f32 %v528, %v532
        %v538 = vcombine.low %v534, %v535
        %v540 = vadd.f32 %v511, %v538
        %s541 = scalar_lea.vmem %s253, 32
        %v542 = vld [vmem:[%s541] sm:$0xf]
        %543 = vrot.lane.b32.xlu0 %v475, 127
        %v544 = vpop.permute.xlu0 %543
        %545 = vrot.lane.b32.xlu0 %v476, 127
        %v546 = vpop.permute.xlu0 %545
        %v547 = vsel %vm354, %v544, %v546
        %v548 = vsel %vm354, %v546, %v544
        %s549 = scalar_lea.vmem %s3, 16
        %v550 = vld [vmem:[%s549] sm:$0x3]
        %v552 = vlaneseq
        %v553 = vshrl.u32 %v552, 7
        %v554 = vsub.s32 0, %v553
        %v555 = vrot.slane %v550, %v554
        %v556 = vlaneseq
        %v557 = vshrl.u32 %v556, 7
        %v558 = vsub.s32 1, %v557
        %v559 = vrot.slane %v550, %v558
        %v562 = vmul.f32 %v547, %v555
        %v563 = vmul.f32 %v548, %v559
        %565 = vset.pattern.permute.xlu0 0
        %566 = vperm.xlu0 %565, %v542
        %v567 = vpop.permute.xlu0 %566
        %v569 = vmul.f32 %v562, %v567
        %v570 = vmul.f32 %v563, %v567
        %v573 = vcombine.low %v569, %v570
        %v575 = vadd.f32 %v540, %v573
        %576 = vst [vmem:[%s240] sm:$0xff] %v575
        %s577 = sand.u32 %s141, 1
        %s578 = scalar_lea.sflag [#allocation3], %s577
        %s579 = sand.u32 %s141, 1
        %s580 = smul.addr %s579, 8
        %s581 = scalar_lea.vmem [#allocation2], %s580
        // Predicated region
        $region37: #{tpu_custom_call.1} parent=35 // pred_check
          %p582 = pneg %p151
        $region38: #{tpu_custom_call.1} parent=35 // pred_check_branch
          %584 = sbr.rel (%p582) target = $region40
        $region39: #{tpu_custom_call.1} parent=35 // pred_region
          %s586 = ssub.s32 128, 128
          %587 = vsyncadd %s578, %s586
          %s588 = smul.addr %s23, 2
          %s589 = smul.addr %s22, 2
          %s590 = sadd.s32 %s588, %s589
          %s591 = smul.addr %s590, 64
          %s592 = scalar_lea.hbm %s4, %s591
          %s594 = sshll.u32 %s581, 4
          %s595 = int_to_ptr.vmem [resolvable:$true] %s594
          %597 = dma.vmem_to_hbm [thread:$0]  %s595, 128, %s592, %s578
        $region40: #{tpu_custom_call.1} parent=35 // pred_fallthru
          _
      $region36: #{tpu_custom_call.1} parent=5 // pred_fallthru
        _
      %p598 = scmp.le.s32.totalorder 2, %s13
      // Predicated region
      $region41: #{tpu_custom_call.1} parent=5 // pred_check
        %p599 = pneg %p598
      $region42: #{tpu_custom_call.1} parent=5 // pred_check_branch
        %601 = sbr.rel (%p599) target = $region44
      $region43: #{tpu_custom_call.1} parent=5 // pred_region
        %s602 = ssub.s32 %s13, 2
        // Predicated region
        $region45: #{tpu_custom_call.1} parent=43 // pred_check
          %p603 = pneg %p157
        $region46: #{tpu_custom_call.1} parent=43 // pred_check_branch
          %605 = sbr.rel (%p603) target = $region48
        $region47: #{tpu_custom_call.1} parent=43 // pred_region
          %s606 = sand.u32 %s142, 1
          %s607 = scalar_lea.sflag [#allocation3], %s606
          %s608 = sand.u32 %s142, 1
          %s609 = smul.addr %s608, 8
          %s610 = scalar_lea.vmem [#allocation2], %s609
          %611 = dma.done %s607, 128
        $region48: #{tpu_custom_call.1} parent=43 // pred_fallthru
          _
      $region44: #{tpu_custom_call.1} parent=5 // pred_fallthru
        _
    $region6: #{tpu_custom_call.1} parent=1 // loop_footer
      %s17 = sadd.s32 1, %s13
    $region7: #{tpu_custom_call.1} parent=1 // loop_footer_branch
      %12 = sbr.rel target = $region3
    $region8: #{tpu_custom_call.1} parent=1 // loop_exit
      _
    %612 = vsyncpa [#allocation3], 1
    %s613 = scalar_lea.sflag [#allocation3], 1
    %614 = vsyncpa %s613, 1

</llo_original>
